<compile_context>
chip_gen: v5e
topology: v5e:2x2
jax: 0.10.0
libtpu: 0.0.40
codegen_flags: <defaults>
</compile_context>

<pallas_src>
import functools
import itertools

import jax
import jax.numpy as jnp
from jax.experimental import pallas as pl
from jax.experimental.pallas import tpu as pltpu

LN_EPS = 1e-6          # timm ViT uses LayerNorm(eps=1e-6)
_NEG_INF = -1e30       # additive key mask value for padded tokens


def _round_up(v, m):
    return ((v + m - 1) // m) * m


# ----------------------------- Pallas kernels -----------------------------

def _linear_kernel(x_ref, w_ref, b_ref, o_ref):
    o_ref[...] = (
        jnp.dot(x_ref[...], w_ref[...], preferred_element_type=jnp.float32)
        + b_ref[...]
    ).astype(o_ref.dtype)


def pallas_linear(x, w, b, *, tile_m=256, out_dtype=jnp.bfloat16):
    """y = x @ w + b, tiled over rows so big batches never exceed VMEM."""
    M, K = x.shape
    N = w.shape[1]
    b = b.reshape(1, N).astype(jnp.float32)
    tm = min(tile_m, _round_up(M, 8))
    tm = max(8, tm - (tm % 8))
    Mp = _round_up(M, tm)
    if Mp != M:
        x = jnp.pad(x, ((0, Mp - M), (0, 0)))
    out = pl.pallas_call(
        _linear_kernel,
        out_shape=jax.ShapeDtypeStruct((Mp, N), out_dtype),
        grid=(Mp // tm,),
        in_specs=[
            pl.BlockSpec((tm, K), lambda i: (i, 0)),
            pl.BlockSpec((K, N), lambda i: (0, 0)),
            pl.BlockSpec((1, N), lambda i: (0, 0)),
        ],
        out_specs=pl.BlockSpec((tm, N), lambda i: (i, 0)),
        compiler_params=pltpu.CompilerParams(dimension_semantics=("parallel",)),
    )(x, w, b)
    return out[:M]


def _block_kernel(xq_ref, xf_ref, g1_ref, be1_ref,
                  wq_ref, bq_ref, wk_ref, bk_ref, wv_ref, bv_ref,
                  wo_ref, bo_ref, g2_ref, be2_ref,
                  w1_ref, b1_ref, w2_ref, b2_ref, o_ref,
                  *, num_heads, t_real):
    """One pre-norm transformer encoder block for one (batch, query-tile) grid step.

    xq_ref: (1, tq, D) query-token tile; xf_ref: (1, T, D) all tokens (keys/values).
    Matmul inputs are bf16, accumulation is f32; LN/softmax math stays f32.
    """
    f32, bf16 = jnp.float32, jnp.bfloat16
    xq = xq_ref[0].astype(f32)                       # (tq, D)
    xf = xf_ref[0].astype(f32)                       # (T, D)
    tq, D = xq.shape
    T = xf.shape[0]
    H = num_heads
    dh = D // H
    scale = 1.0 / float(dh) ** 0.5

    def layernorm(z, g_ref, b_ref):
        mu = jnp.mean(z, axis=-1, keepdims=True)
        var = jnp.mean(jnp.square(z - mu), axis=-1, keepdims=True)
        return (z - mu) * jax.lax.rsqrt(var + LN_EPS) * g_ref[...] + b_ref[...]

    # ---- LayerNorm 1 (queries use the tile, keys/values use the full sequence) ----
    hq = layernorm(xq, g1_ref, be1_ref)              # (tq, D)
    hf = layernorm(xf, g1_ref, be1_ref)              # (T, D)

    # ---- Fused multi-head self-attention ----
    # q/k/v projections: full-width N=D matmuls (MXU-friendly), bf16 in, f32 acc.
    q = jnp.dot(hq.astype(bf16), wq_ref[...], preferred_element_type=f32) + bq_ref[...]
    k = jnp.dot(hf.astype(bf16), wk_ref[...], preferred_element_type=f32) + bk_ref[...]
    v = jnp.dot(hf.astype(bf16), wv_ref[...], preferred_element_type=f32) + bv_ref[...]

    q = (q * scale).astype(bf16)
    k = k.astype(bf16)
    v = v.astype(bf16)

    # Head-major column split (matches timm's reshape(T, 3, H, dh)); stacked to a
    # leading head axis so the attention matmuls run as batched einsums.
    q3 = jnp.stack([q[:, h * dh:(h + 1) * dh] for h in range(H)], axis=0)  # (H, tq, dh)
    k3 = jnp.stack([k[:, h * dh:(h + 1) * dh] for h in range(H)], axis=0)  # (H, T, dh)
    v3 = jnp.stack([v[:, h * dh:(h + 1) * dh] for h in range(H)], axis=0)  # (H, T, dh)

    s = jnp.einsum('hqd,hkd->hqk', q3, k3, preferred_element_type=f32)      # (H, tq, T)
    key_idx = jax.lax.broadcasted_iota(jnp.int32, (1, 1, T), 2)
    s = jnp.where(key_idx < t_real, s, _NEG_INF)     # mask padded key tokens

    s = s - jnp.max(s, axis=-1, keepdims=True)
    p = jnp.exp(s)
    p = p * pl.reciprocal(jnp.sum(p, axis=-1, keepdims=True), approx=True)

    o3 = jnp.einsum('hqk,hkd->hqd', p.astype(bf16), v3,
                    preferred_element_type=f32)                             # (H, tq, dh)
    attn = jnp.concatenate([o3[h] for h in range(H)], axis=-1)              # (tq, D)

    # Single full-width output projection; bias added once afterwards.
    attn = jnp.dot(attn.astype(bf16), wo_ref[...],
                   preferred_element_type=f32) + bo_ref[...]
    x = xq + attn

    # ---- LayerNorm 2 + MLP ----
    h2 = layernorm(x, g2_ref, be2_ref)
    m = jnp.dot(h2.astype(bf16), w1_ref[...], preferred_element_type=f32) + b1_ref[...]
    # TODO(synk): PyTorch nn.GELU defaults to exact erf-GELU; tanh approximation is
    # kept to stay within guaranteed Mosaic elementwise lowerings.
    m = jax.nn.gelu(m, approximate=True)
    m = jnp.dot(m.astype(bf16), w2_ref[...], preferred_element_type=f32) + b2_ref[...]
    x = x + m

    o_ref[0] = x.astype(o_ref.dtype)


def pallas_transformer_block(x, p, *, num_heads, t_real, q_tile):
    """x: (B, T_pad, D) bf16 -> (B, T_pad, D) bf16."""
    B, T, D = x.shape
    Hm = p["w_mlp1"].shape[1]
    assert T % q_tile == 0 and q_tile % 8 == 0
    nq = T // q_tile

    # Split the packed qkv weight/bias (timm layout [q | k | v], head-major inside
    # each chunk) outside the kernel so the kernel only does full-width matmuls.
    w_q, w_k, w_v = (p["w_qkv"][:, :D], p["w_qkv"][:, D:2 * D], p["w_qkv"][:, 2 * D:])
    b_q, b_k, b_v = (p["b_qkv"][:, :D], p["b_qkv"][:, D:2 * D], p["b_qkv"][:, 2 * D:])

    kernel = functools.partial(_block_kernel, num_heads=num_heads, t_real=t_real)

    def rep(shape):
        return pl.BlockSpec(shape, lambda b, t, _n=len(shape): (0,) * _n)

    return pl.pallas_call(
        kernel,
        out_shape=jax.ShapeDtypeStruct((B, T, D), jnp.bfloat16),
        grid=(B, nq),
        in_specs=[
            pl.BlockSpec((1, q_tile, D), lambda b, t: (b, t, 0)),   # query tile
            pl.BlockSpec((1, T, D), lambda b, t: (b, 0, 0)),        # full tokens (K/V)
            rep((1, D)), rep((1, D)),                               # ln1 gamma / beta
            rep((D, D)), rep((1, D)),                               # q proj
            rep((D, D)), rep((1, D)),                               # k proj
            rep((D, D)), rep((1, D)),                               # v proj
            rep((D, D)), rep((1, D)),                               # attn out proj
            rep((1, D)), rep((1, D)),                               # ln2 gamma / beta
            rep((D, Hm)), rep((1, Hm)),                             # mlp fc1
            rep((Hm, D)), rep((1, D)),                              # mlp fc2
        ],
        out_specs=pl.BlockSpec((1, q_tile, D), lambda b, t: (b, t, 0)),
        compiler_params=pltpu.CompilerParams(
            dimension_semantics=("parallel", "parallel"),
            # At ViT-B scale size this from the bf16 weight + activation footprint;
            # 64 MiB covers the resident bf16 weight set well inside v7x's VMEM.
            vmem_limit_bytes=64 * 1024 * 1024),
    )(x, x,
      p["ln1_g"], p["ln1_b"],
      w_q, b_q, w_k, b_k, w_v, b_v,
      p["w_proj"], p["b_proj"],
      p["ln2_g"], p["ln2_b"],
      p["w_mlp1"], p["b_mlp1"], p["w_mlp2"], p["b_mlp2"])


def _head_kernel(x_ref, g_ref, be_ref, wp_ref, bp_ref, o_ref, *, num_prefix, t_real):
    """Final trunk LayerNorm -> masked avg pool (cls + padding excluded) -> head Linear."""
    x = x_ref[...].astype(jnp.float32)               # (tb, T, D)
    mu = jnp.mean(x, axis=-1, keepdims=True)
    var = jnp.mean(jnp.square(x - mu), axis=-1, keepdims=True)
    h = (x - mu) * jax.lax.rsqrt(var + LN_EPS) * g_ref[...] + be_ref[...]
    T = x.shape[1]
    idx = jax.lax.broadcasted_iota(jnp.int32, (1, T, 1), 1)
    mask = jnp.logical_and(idx >= num_prefix, idx < t_real)
    h = jnp.where(mask, h, 0.0)
    pooled = jnp.sum(h, axis=1) / float(t_real - num_prefix)   # (tb, D)
    # head: Dropout(p=0.0) is identity in eval; then Linear(D, embed_dim)
    o_ref[...] = (
        jnp.dot(pooled.astype(jnp.bfloat16), wp_ref[...],
                preferred_element_type=jnp.float32) + bp_ref[...]
    ).astype(o_ref.dtype)


def pallas_head(x, norm_g, norm_b, w_proj, b_proj, *, num_prefix, t_real):
    B, T, D = x.shape
    E = w_proj.shape[1]
    tb = 8                                            # batch tile (sublane aligned)
    Bp = _round_up(B, tb)
    if Bp != B:
        x = jnp.pad(x, ((0, Bp - B), (0, 0), (0, 0)))
    kernel = functools.partial(_head_kernel, num_prefix=num_prefix, t_real=t_real)
    out = pl.pallas_call(
        kernel,
        out_shape=jax.ShapeDtypeStruct((Bp, E), jnp.float32),
        grid=(Bp // tb,),
        in_specs=[
            pl.BlockSpec((tb, T, D), lambda i: (i, 0, 0)),
            pl.BlockSpec((1, D), lambda i: (0, 0)),
            pl.BlockSpec((1, D), lambda i: (0, 0)),
            pl.BlockSpec((D, E), lambda i: (0, 0)),
            pl.BlockSpec((1, E), lambda i: (0, 0)),
        ],
        out_specs=pl.BlockSpec((tb, E), lambda i: (i, 0)),
        compiler_params=pltpu.CompilerParams(dimension_semantics=("parallel",)),
    )(x, norm_g, norm_b, w_proj, b_proj)
    return out[:B]


# ----------------------------- model wrapper -----------------------------

def init_params(key, *, in_chans, patch, dim, depth, mlp_hidden, embed_dim,
                num_tokens):
    counter = itertools.count(1)

    def nrm(shape, std=0.02, dtype=jnp.bfloat16):
        k = jax.random.fold_in(key, next(counter))
        return (jax.random.normal(k, shape, jnp.float32) * std).astype(dtype)

    params = {
        # Conv2d(C, D, p, p) with stride=p, flattened to a (C*p*p, D) matmul. bf16.
        "patch_w": nrm((in_chans * patch * patch, dim)),
        "patch_b": jnp.zeros((1, dim), jnp.float32),
        "cls_token": nrm((1, 1, dim), dtype=jnp.float32),
        "pos_embed": nrm((1, num_tokens, dim), dtype=jnp.float32),
        "norm_g": jnp.ones((1, dim), jnp.float32),
        "norm_b": jnp.zeros((1, dim), jnp.float32),
        "head_w": nrm((dim, embed_dim)),
        "head_b": jnp.zeros((1, embed_dim), jnp.float32),
        "blocks": [],
    }
    for _ in range(depth):
        params["blocks"].append({
            "ln1_g": jnp.ones((1, dim), jnp.float32),
            "ln1_b": jnp.zeros((1, dim), jnp.float32),
            "w_qkv": nrm((dim, 3 * dim)),
            "b_qkv": jnp.zeros((1, 3 * dim), jnp.float32),
            "w_proj": nrm((dim, dim)),
            "b_proj": jnp.zeros((1, dim), jnp.float32),
            "ln2_g": jnp.ones((1, dim), jnp.float32),
            "ln2_b": jnp.zeros((1, dim), jnp.float32),
            "w_mlp1": nrm((dim, mlp_hidden)),
            "b_mlp1": jnp.zeros((1, mlp_hidden), jnp.float32),
            "w_mlp2": nrm((mlp_hidden, dim)),
            "b_mlp2": jnp.zeros((1, dim), jnp.float32),
        })
    return params


def timm_model_forward(x_nchw, params, *, patch, num_heads, q_tile=128):
    """x_nchw: (B, C, H, W) float32, same layout as the PyTorch module input."""
    B, C, H, W = x_nchw.shape
    p = patch
    gh, gw = H // p, W // p
    D = params["patch_w"].shape[1]
    assert D % num_heads == 0

    # glue: im2col for the stride=kernel patch-embed conv (NCHW -> patch rows)
    xp = (x_nchw.reshape(B, C, gh, p, gw, p)
                .transpose(0, 2, 4, 1, 3, 5)
                .reshape(B * gh * gw, C * p * p)).astype(jnp.bfloat16)
    tokens = pallas_linear(xp, params["patch_w"], params["patch_b"])
    tokens = tokens.reshape(B, gh * gw, D).astype(jnp.float32)

    cls = jnp.broadcast_to(params["cls_token"], (B, 1, D))
    x = jnp.concatenate([cls, tokens], axis=1) + params["pos_embed"]   # (B, T_real, D)
    T_real = x.shape[1]

    # pad tokens to a multiple of 8 (and of the query tile); padded keys are masked.
    tq = min(q_tile, _round_up(T_real, 8))
    tq = max(8, tq - (tq % 8))
    T_pad = _round_up(T_real, tq)
    if T_pad != T_real:
        x = jnp.pad(x, ((0, 0), (0, T_pad - T_real), (0, 0)))
    x = x.astype(jnp.bfloat16)

    for blk in params["blocks"]:
        x = pallas_transformer_block(x, blk, num_heads=num_heads,
                                     t_real=T_real, q_tile=tq)

    return pallas_head(x, params["norm_g"], params["norm_b"],
                       params["head_w"], params["head_b"],
                       num_prefix=1, t_real=T_real)


# ---------------------------------- main ----------------------------------

if __name__ == "__main__":
    B, C, H, W = 2, 3, 16, 16        # small synthetic "image"
    PATCH, DIM, DEPTH, HEADS = 4, 32, 2, 2
    MLP_HIDDEN, EMBED_DIM = 64, 16
    num_patches = (H // PATCH) * (W // PATCH)        # 16 -> T_real = 17, padded to 24

    key = jax.random.PRNGKey(0)
    kx, kp = jax.random.split(key)
    x = jax.random.normal(kx, (B, C, H, W), jnp.float32)
    params = init_params(kp, in_chans=C, patch=PATCH, dim=DIM, depth=DEPTH,
                         mlp_hidden=MLP_HIDDEN, embed_dim=EMBED_DIM,
                         num_tokens=num_patches + 1)

    # q_tile=8 exercises the (batch, query-tile) grid: grid = (2, 3)
    out = timm_model_forward(x, params, patch=PATCH, num_heads=HEADS, q_tile=8)
    out = jax.block_until_ready(out)
    assert out.shape == (B, EMBED_DIM), out.shape
    assert bool(jnp.all(jnp.isfinite(out)))
    print("KERNEL_OK")
</pallas_src>

<mosaic_0001>
module attributes {stable_mosaic.version = 11 : i64} {
  func.func @_linear_kernel(%arg0: i32, %arg1: memref<32x48xbf16, #tpu.memory_space<vmem>>, %arg2: memref<48x32xbf16, #tpu.memory_space<vmem>>, %arg3: memref<1x32xf32, #tpu.memory_space<vmem>>, %arg4: memref<32x32xbf16, #tpu.memory_space<vmem>>) attributes {dimension_semantics = [#tpu.dimension_semantics<parallel>], iteration_bounds = array<i64: 1>, scalar_prefetch = 0 : i64, scratch_operands = 0 : i64, tpu.core_type = #tpu.core_type<tc>, window_params = [{transform_indices = @transform_0, window_bounds = array<i64: 32, 48>}, {pipeline_mode = #tpu.pipeline_mode<synchronous>, transform_indices = @transform_1, window_bounds = array<i64: 48, 32>}, {pipeline_mode = #tpu.pipeline_mode<synchronous>, transform_indices = @transform_2, window_bounds = array<i64: 1, 32>}, {transform_indices = @transform_3, window_bounds = array<i64: 32, 32>}]} {
    %c0 = arith.constant 0 : index
    %c0_0 = arith.constant 0 : index
    %0 = vector.load %arg1[%c0, %c0_0] : memref<32x48xbf16, #tpu.memory_space<vmem>>, vector<32x48xbf16>
    %c0_1 = arith.constant 0 : index
    %c0_2 = arith.constant 0 : index
    %1 = vector.load %arg2[%c0_1, %c0_2] : memref<48x32xbf16, #tpu.memory_space<vmem>>, vector<48x32xbf16>
    %cst = arith.constant dense<0.000000e+00> : vector<32x32xf32>
    %2 = tpu.matmul %0, %1, %cst {dimension_numbers = #tpu.dot_dimension_numbers<[1], [0], [0], [1], [0, 0, 1, 1], [], []>} : vector<32x48xbf16>, vector<48x32xbf16>, vector<32x32xf32> -> vector<32x32xf32>
    %c0_3 = arith.constant 0 : index
    %c0_4 = arith.constant 0 : index
    %3 = vector.load %arg3[%c0_3, %c0_4] : memref<1x32xf32, #tpu.memory_space<vmem>>, vector<1x32xf32>
    %4 = vector.broadcast %3 : vector<1x32xf32> to vector<32x32xf32>
    %5 = arith.addf %2, %4 : vector<32x32xf32>
    %6 = arith.truncf %5 : vector<32x32xf32> to vector<32x32xbf16>
    %c0_5 = arith.constant 0 : index
    %c0_6 = arith.constant 0 : index
    %7 = vector.load %arg4[%c0_5, %c0_6] : memref<32x32xbf16, #tpu.memory_space<vmem>>, vector<32x32xbf16>
    tpu.vector_store %arg4[%c0_5, %c0_6], %6 {strides = array<i32>} : memref<32x32xbf16, #tpu.memory_space<vmem>>, vector<32x32xbf16>,
    return
  }
  func.func @transform_0(%arg0: i32) -> (i32, i32) {
    %c0_i32 = arith.constant 0 : i32
    %c0_i32_0 = arith.constant 0 : i32
    return %arg0, %c0_i32 : i32, i32
  }
  func.func @transform_1(%arg0: i32) -> (i32, i32) {
    %c0_i32 = arith.constant 0 : i32
    %c0_i32_0 = arith.constant 0 : i32
    %c0_i32_1 = arith.constant 0 : i32
    return %c0_i32, %c0_i32_0 : i32, i32
  }
  func.func @transform_2(%arg0: i32) -> (i32, i32) {
    %c0_i32 = arith.constant 0 : i32
    %c0_i32_0 = arith.constant 0 : i32
    %c0_i32_1 = arith.constant 0 : i32
    return %c0_i32, %c0_i32_0 : i32, i32
  }
  func.func @transform_3(%arg0: i32) -> (i32, i32) {
    %c0_i32 = arith.constant 0 : i32
    %c0_i32_0 = arith.constant 0 : i32
    return %arg0, %c0_i32 : i32, i32
  }
}

</mosaic_0001>

<llo_original>
// kernel: tpu_custom_call.1
$region0: #{tpu_custom_call.1}
  #allocation0 [shape = 'u32[]', space=smem, size = 0x4, offset = 0x4, fixed_abs, tag = 'smem constant byte address 0x4 - core index']
  #allocation1 [shape = 'u32[72,128]{1,0:T(1,128)}', space=vmem, size = 0x9000, scoped, tag = 'internal scratch']
  %s0 = inlined_call_operand.vmem [shape: bf16[32,48], index: 0, kind: input, shape index: {}]
  %s1 = inlined_call_operand.vmem [shape: bf16[48,32], index: 1, kind: input, shape index: {}]
  %s2 = inlined_call_operand.vmem [shape: f32[1,32], index: 2, kind: input, shape index: {}]
  %s3 = inlined_call_operand.hbm [shape: bf16[32,32], index: 3, kind: output, shape index: {}]
  %s4 = sld [smem:[#allocation0]]
  $region22: #{tpu_custom_call.1} parent=0
    _
  %s6 = ssub.s32 1, %s4
  %s7 = scalar_select 0, %s6, %s4
  $region1: #{tpu_custom_call.1} parent=0
    #allocation2 [shape = 'u8[8192]{0}', space=vmem, size = 0x2000, scoped, tag = 'output window, operand 0, single buffered']
    #allocation3 [shape = 's32[1]{0}', space=sflag, size = 0x4, scoped, tag = 'scoped memory for tpu_custom_call.1']
    %8 = vsyncpa [#allocation3], 0
    // Predicated region
    $region2: #{tpu_custom_call.1} parent=1 // pred_check
      _
    $region3: #{tpu_custom_call.1} parent=1 // pred_check_branch
      %10 = sbr.rel (0) target = $region5
    $region4: #{tpu_custom_call.1} parent=1 // pred_region
      _
    $region5: #{tpu_custom_call.1} parent=1 // pred_fallthru
      _
    // Predicated region
    $region6: #{tpu_custom_call.1} parent=1 // pred_check
      _
    $region7: #{tpu_custom_call.1} parent=1 // pred_check_branch
      %12 = sbr.rel (0) target = $region9
    $region8: #{tpu_custom_call.1} parent=1 // pred_region
      _
    $region9: #{tpu_custom_call.1} parent=1 // pred_fallthru
      _
    // Predicated region
    $region10: #{tpu_custom_call.1} parent=1 // pred_check
      _
    $region11: #{tpu_custom_call.1} parent=1 // pred_check_branch
      %14 = sbr.rel (0) target = $region13
    $region12: #{tpu_custom_call.1} parent=1 // pred_region
      _
    $region13: #{tpu_custom_call.1} parent=1 // pred_fallthru
      _
    %v16 = vld [vmem:[%s0] sm:$0xf]
    %v17 = vld [vmem:[%s0 + $0x4] sm:$0xf]
    %v18 = vld [vmem:[%s0 + $0x8] sm:$0xf]
    %v19 = vld [vmem:[%s0 + $0xc] sm:$0xf]
    %v20 = vld [vmem:[%s1] sm:$0xf]
    %v21 = vld [vmem:[%s1 + $0x4] sm:$0xf]
    %v22 = vld [vmem:[%s1 + $0x8] sm:$0xf]
    %v23 = vld [vmem:[%s1 + $0xc] sm:$0xf]
    %v24 = vld [vmem:[%s1 + $0x10] sm:$0xf]
    %v25 = vld [vmem:[%s1 + $0x14] sm:$0xf]
    %v26 = vld [vmem:[%s2] sm:$0x1]
    %v28 = vperm.slane %v26, 0
    %v34 = vunpack.c.l.b16 %v16
    %v35 = vunpack.c.l.b16 %v17
    %v36 = vunpack.c.l.b16 %v18
    %v37 = vunpack.c.l.b16 %v19
    %v38 = vpack.c.b16 %v35, %v34
    %v39 = vpack.c.b16 %v37, %v36
    %v46 = vunpack.c.l.b16 %v20
    %v47 = vunpack.c.l.b16 %v21
    %v48 = vunpack.c.l.b16 %v22
    %v49 = vunpack.c.l.b16 %v23
    %v50 = vunpack.c.l.b16 %v24
    %v51 = vunpack.c.l.b16 %v25
    %v52 = vpack.c.b16 %v47, %v46
    %v53 = vpack.c.b16 %v49, %v48
    %v54 = vpack.c.b16 %v51, %v50
    %vm58 = vcmask 392192
    %v60 = vsel %vm58, %v38, 0
    %v63 = vsel %vm58, %v39, 0
    %65 = vmatpush.bf16.msra.mxu0 0
    %66 = vmatpush.bf16.msra.mxu0 0
    %67 = vmatpush.bf16.msra.mxu0 0
    %68 = vmatpush.bf16.msra.mxu0 0
    %69 = vmatpush.bf16.msra.mxu0 0
    %70 = vmatpush.bf16.msra.mxu0 %v54
    %71 = vmatpush.bf16.msra.mxu0 %v53
    %72 = vmatpush.bf16.msra.mxu0 %v52
    %73 = vmatmul.bf16.gmra.mxu0 %v60
    %v74 = vpop.f32.mrf.mxu0
    %v75 = vadd.f32 %v28, %v74
    %v76 = vpop.f32.mrf.mxu0
    %v77 = vadd.f32 %v28, %v76
    %78 = vmatmul.bf16.gmra.mxu0 %v63
    %v79 = vpop.f32.mrf.mxu0
    %v80 = vadd.f32 %v28, %v79
    %v81 = vpop.f32.mrf.mxu0
    %v82 = vadd.f32 %v28, %v81
    %83 = vdwg.mxu0
    %v84 = vpack.c.bf16 %v75, %v75
    %v85 = vpack.c.bf16 %v77, %v77
    %v86 = vpack.c.bf16 %v80, %v80
    %v87 = vpack.c.bf16 %v82, %v82
    %vm88 = vcmask 257024
    %89 = vst.msk [vmem:[#allocation2] sm:$0xf] %vm88, %v84
    %90 = vst.msk [vmem:[#allocation2 + $0x4] sm:$0xf] %vm88, %v85
    %91 = vst.msk [vmem:[#allocation2 + $0x8] sm:$0xf] %vm88, %v86
    %92 = vst.msk [vmem:[#allocation2 + $0xc] sm:$0xf] %vm88, %v87
    // Predicated region
    $region14: #{tpu_custom_call.1} parent=1 // pred_check
      _
    $region15: #{tpu_custom_call.1} parent=1 // pred_check_branch
      %94 = sbr.rel (0) target = $region17
    $region16: #{tpu_custom_call.1} parent=1 // pred_region
      %96 = vsyncadd [#allocation3], 0
      %s97 = sshll.u32 [#allocation2], 4
      %s98 = int_to_ptr.vmem [resolvable:$true] %s97
      %s99 = sshll.u32 %s3, 4
      %s100 = int_to_ptr.hbm [resolvable:$true] %s99
      %105 = dma.vmem_to_hbm [thread:$0]  %s98, 256, %s100, [#allocation3], 64, 64, 4
    $region17: #{tpu_custom_call.1} parent=1 // pred_fallthru
      _
    // Predicated region
    $region18: #{tpu_custom_call.1} parent=1 // pred_check
      _
    $region19: #{tpu_custom_call.1} parent=1 // pred_check_branch
      %107 = sbr.rel (0) target = $region21
    $region20: #{tpu_custom_call.1} parent=1 // pred_region
      %109 = dma.done [#allocation3], 256
    $region21: #{tpu_custom_call.1} parent=1 // pred_fallthru
      _
    %110 = vsyncpa [#allocation3], 1

</llo_original>
